<compile_context>
chip_gen: v5e
topology: v5e:2x2
jax: 0.10.0
libtpu: 0.0.40
codegen_flags: <defaults>
</compile_context>

<pallas_src>
import math

import jax
import jax.numpy as jnp
from jax.experimental import pallas as pl
from jax.experimental.pallas import tpu as pltpu

_GELU_C = math.sqrt(2.0 / math.pi)
_VMEM_LIMIT = 32 * 1024 * 1024


def _round_up(x, m):
    return (x + m - 1) // m * m


def _pick_tile_m(M, tile_m):
    # Clamp to the problem size, keep >= 2 M-tiles when possible so the
    # "parallel" M axis actually splits across both TensorCores on v7x,
    # and keep the sublane multiple of 8.
    half = _round_up(-(-M // 2), 8)
    return max(8, min(tile_m, half, _round_up(M, 8)))


def _gelu_tanh(x):
    # tanh-approximate GELU: the tanh lands on the EUP slot (idle otherwise)
    # instead of burning VALU slots on an erf polynomial.
    return 0.5 * x * (1.0 + jnp.tanh(_GELU_C * (x + 0.044715 * x * x * x)))


# -----------------------------------------------------------------------------
# Pallas kernels
# -----------------------------------------------------------------------------
def _linear_kernel(x_ref, w_ref, b_ref, o_ref):
    # y = x @ w + b ; bf16 MXU inputs, f32 accumulation.
    x = x_ref[...].astype(w_ref.dtype)
    y = jnp.dot(x, w_ref[...], preferred_element_type=jnp.float32) + b_ref[...]
    o_ref[...] = y.astype(o_ref.dtype)


def _prompt_fused_kernel(hand_ref, emb_ref, w1_ref, b1_ref, w2_ref, b2_ref,
                         o_ref, z_ref):
    # grid = (m_tiles, depth); depth is the inner (fast) axis.
    # z = hand + emb is computed once per M-tile and kept resident in VMEM.
    @pl.when(pl.program_id(1) == 0)
    def _():
        z_ref[...] = hand_ref[...] + emb_ref[...]

    h = jnp.dot(z_ref[...], w1_ref[...],
                preferred_element_type=jnp.float32) + b1_ref[...]
    h = _gelu_tanh(h)
    o = jnp.dot(h.astype(w2_ref.dtype), w2_ref[...],
                preferred_element_type=jnp.float32) + b2_ref[...]
    o_ref[...] = o.astype(o_ref.dtype)


# -----------------------------------------------------------------------------
# pallas_call wrappers
# -----------------------------------------------------------------------------
def pallas_linear(x, w, b, *, out_dtype=jnp.bfloat16, tile_m=1024):
    """y = x @ w + b.   x:(M,K)   w:(K,N) bf16   b:(1,N) f32  -> (M,N)."""
    M, K = x.shape
    Kw, N = w.shape
    assert K == Kw and b.shape == (1, N)
    tile_m = _pick_tile_m(M, tile_m)
    grid = (pl.cdiv(M, tile_m),)
    cost = pl.CostEstimate(
        flops=2 * M * K * N,
        transcendentals=0,
        bytes_accessed=(M * K * x.dtype.itemsize
                        + K * N * w.dtype.itemsize
                        + M * N * jnp.dtype(out_dtype).itemsize))
    return pl.pallas_call(
        _linear_kernel,
        out_shape=jax.ShapeDtypeStruct((M, N), out_dtype),
        grid=grid,
        in_specs=[
            pl.BlockSpec((tile_m, K), lambda i: (i, 0)),
            pl.BlockSpec((K, N), lambda i: (0, 0)),
            pl.BlockSpec((1, N), lambda i: (0, 0)),
        ],
        out_specs=pl.BlockSpec((tile_m, N), lambda i: (i, 0)),
        compiler_params=pltpu.CompilerParams(
            dimension_semantics=("parallel",),
            vmem_limit_bytes=_VMEM_LIMIT),
        cost_estimate=cost,
    )(x, w, b)


def pallas_prompt_fused(hand, emb, w_lw, b_lw, w_sh, b_sh, *,
                        out_dtype=jnp.bfloat16, tile_m=1024):
    """out[d] = GELU((hand+emb) @ w_lw[d] + b_lw[d]) @ w_sh + b_sh, all d fused.

    hand/emb: (M, Hp) bf16, w_lw: (depth, Hp, Hp) bf16, b_lw: (depth, 1, Hp) f32,
    w_sh: (Hp, D) bf16, b_sh: (1, D) f32  ->  (depth, M, D) out_dtype.
    """
    M, Hp = hand.shape
    depth = w_lw.shape[0]
    D = w_sh.shape[1]
    tile_m = _pick_tile_m(M, tile_m)
    grid = (pl.cdiv(M, tile_m), depth)      # depth innermost: inputs stay resident
    cost = pl.CostEstimate(
        flops=2 * M * depth * (Hp * Hp + Hp * D),
        transcendentals=M * depth * Hp,      # one tanh per hidden activation
        bytes_accessed=(2 * M * Hp * hand.dtype.itemsize
                        + depth * Hp * Hp * w_lw.dtype.itemsize
                        + depth * Hp * 4
                        + Hp * D * w_sh.dtype.itemsize + D * 4
                        + depth * M * D * jnp.dtype(out_dtype).itemsize))
    return pl.pallas_call(
        _prompt_fused_kernel,
        out_shape=jax.ShapeDtypeStruct((depth, M, D), out_dtype),
        grid=grid,
        in_specs=[
            pl.BlockSpec((tile_m, Hp), lambda i, d: (i, 0)),
            pl.BlockSpec((tile_m, Hp), lambda i, d: (i, 0)),
            pl.BlockSpec((None, Hp, Hp), lambda i, d: (d, 0, 0)),
            pl.BlockSpec((None, 1, Hp), lambda i, d: (d, 0, 0)),
            pl.BlockSpec((Hp, D), lambda i, d: (0, 0)),
            pl.BlockSpec((1, D), lambda i, d: (0, 0)),
        ],
        out_specs=pl.BlockSpec((None, tile_m, D), lambda i, d: (d, i, 0)),
        scratch_shapes=[pltpu.VMEM((tile_m, Hp), jnp.bfloat16)],
        compiler_params=pltpu.CompilerParams(
            dimension_semantics=("parallel", "arbitrary"),
            vmem_limit_bytes=_VMEM_LIMIT),
        cost_estimate=cost,
    )(hand, emb, w_lw, b_lw, w_sh, b_sh)


# -----------------------------------------------------------------------------
# PromptGenerator in JAX with all dense compute in Pallas.
# -----------------------------------------------------------------------------
class PromptGeneratorPallas:
    def __init__(self, key, *, scale_factor, embed_dim, depth, freq_nums,
                 img_size, patch_size):
        self.scale_factor = scale_factor
        self.embed_dim = embed_dim
        self.depth = depth
        self.freq_nums = freq_nums
        self.img_size = img_size
        self.patch_size = patch_size

        hid = embed_dim // scale_factor
        self.hid = hid
        # lane-dense hidden width (zero-padded).
        # NOTE: the hid -> hid_p padding is only inert because every padded
        # bias is zero and GELU(0) == 0; keep it that way.
        self.hid_p = _round_up(hid, 128)
        hid_p = self.hid_p

        keys = jax.random.split(key, 3 + depth)

        def trunc_normal(k, shape, std=0.02):
            # torch trunc_normal_(std=0.02, a=-2, b=2): bounds at +/-100 sigma,
            # i.e. effectively N(0, std^2).
            return jnp.clip(std * jax.random.normal(k, shape, jnp.float32),
                            -2.0, 2.0)

        # shared_mlp: Linear(hid -> embed_dim); stored (hid_p, D), padded rows = 0.
        w_sh = jnp.zeros((hid_p, embed_dim), jnp.float32)
        w_sh = w_sh.at[:hid].set(trunc_normal(keys[0], (hid, embed_dim)))
        self.w_shared = w_sh.astype(jnp.bfloat16)
        self.b_shared = jnp.zeros((1, embed_dim), jnp.float32)

        # embedding_generator: Linear(embed_dim -> hid); stored (D, hid_p).
        w_eg = jnp.zeros((embed_dim, hid_p), jnp.float32)
        w_eg = w_eg.at[:, :hid].set(trunc_normal(keys[1], (embed_dim, hid)))
        self.w_eg = w_eg.astype(jnp.bfloat16)
        self.b_eg = jnp.zeros((1, hid_p), jnp.float32)

        # lightweight_mlp_i: Linear(hid -> hid) + GELU; stacked over depth.
        w_lw = jnp.zeros((depth, hid_p, hid_p), jnp.float32)
        for i in range(depth):
            w_lw = w_lw.at[i, :hid, :hid].set(trunc_normal(keys[3 + i], (hid, hid)))
        self.w_lw = w_lw.astype(jnp.bfloat16)
        self.b_lw = jnp.zeros((depth, 1, hid_p), jnp.float32)

        # prompt_generator: PatchEmbed2 = Conv2d(3, hid, kernel=patch, stride=patch)
        p = patch_size
        fan_out = p * p * hid                     # Conv2d init: N(0, sqrt(2/fan_out))
        wc = math.sqrt(2.0 / fan_out) * jax.random.normal(
            keys[2], (hid, 3, p, p), jnp.float32)
        wc = wc.reshape(hid, 3 * p * p).T         # im2col order (c, ph, pw)
        w_conv = jnp.zeros((3 * p * p, hid_p), jnp.float32).at[:, :hid].set(wc)
        self.w_conv = w_conv.astype(jnp.bfloat16)
        self.b_conv = jnp.zeros((1, hid_p), jnp.float32)

    # ---- FFT high-pass filter (same as PromptGenerator.fft) ------------------
    # TODO(synk): FFT/IFFT has no Pallas primitive; it stays in plain JAX (XLA TPU FFT).
    def fft(self, x, rate):
        N, C, H, W = x.shape
        line = int((H * W * rate) ** 0.5 // 2)
        hi = jax.lax.broadcasted_iota(jnp.int32, (H, W), 0)
        wi = jax.lax.broadcasted_iota(jnp.int32, (H, W), 1)
        low = ((hi >= H // 2 - line) & (hi < H // 2 + line) &
               (wi >= W // 2 - line) & (wi < W // 2 + line))
        keep = 1.0 - low.astype(jnp.float32)          # = (1 - mask) of the torch code
        f = jnp.fft.fftshift(jnp.fft.fft2(x, norm="forward"))
        f = f * keep                                   # broadcast over (N, C, H, W)
        f = jnp.fft.ifftshift(f)
        inv = jnp.fft.ifft2(f, norm="forward").real
        return jnp.abs(inv)

    # ---- init_handcrafted: fft -> PatchEmbed2 conv (as Pallas matmul) --------
    def init_handcrafted(self, x):
        x = self.fft(x, self.freq_nums)                # (N, 3, H, W)
        N, C, H, W = x.shape
        p = self.patch_size
        Hp, Wp = H // p, W // p
        # im2col for stride==kernel conv; patch order (c, ph, pw) matches weight.
        # The bf16 cast fuses into this already-materialized copy, halving the
        # kernel's activation HBM read.
        # TODO(synk): the 6-D transpose materializes one re-laid-out copy in XLA;
        # could be folded into the kernel's index_map for zero-copy patch gather.
        patches = x.reshape(N, C, Hp, p, Wp, p)
        patches = patches.transpose(0, 2, 4, 1, 3, 5).reshape(N * Hp * Wp, C * p * p)
        patches = patches.astype(jnp.bfloat16)
        out = pallas_linear(patches, self.w_conv, self.b_conv)   # (N*Hp*Wp, hid_p) bf16
        # == conv output (N, hid, Hp, Wp).view(N, hid, S).permute(0, 2, 1), hid-padded.
        return out.reshape(N, Hp * Wp, self.hid_p)

    # ---- init_embeddings: Linear(embed_dim -> hid) ----------------------------
    def init_embeddings(self, x):
        # x: (N, H', W', embed_dim) channels-last, as at the PyTorch call site.
        # (The torch source reshapes before permuting the data, which scrambles
        #  channels/spatial; we implement the intended channels-last tokenization.)
        N, Hh, Ww, C = x.shape
        flat = x.reshape(N * Hh * Ww, C).astype(jnp.bfloat16)
        out = pallas_linear(flat, self.w_eg, self.b_eg)          # (N*S, hid_p) bf16
        return out.reshape(N, Hh * Ww, self.hid_p)

    # ---- get_prompt: depth x (lightweight_mlp + GELU -> shared_mlp), fused ----
    def get_prompt(self, handcrafted_feature, embedding_feature):
        """Returns the stacked (depth, N, S, embed_dim) array.

        The torch module returns [prompts[d] for d in range(depth)]; returning
        the stacked array instead avoids depth extra HBM copies of the largest
        tensor -- consumers can slice prompts[d] lazily.
        """
        N, S, Hp = handcrafted_feature.shape
        hand = handcrafted_feature.reshape(N * S, Hp)
        emb = embedding_feature.reshape(N * S, Hp)
        fused = pallas_prompt_fused(hand, emb, self.w_lw, self.b_lw,
                                    self.w_shared, self.b_shared)   # (depth, N*S, D) bf16
        return fused.reshape(self.depth, N, S, self.embed_dim)

    def __call__(self, x, embed):
        handcrafted = self.init_handcrafted(x)
        embedding = self.init_embeddings(embed)
        return self.get_prompt(handcrafted, embedding)


# -----------------------------------------------------------------------------
# Pure-JAX f32 reference (same padded weight layout) for a tolerance check.
# -----------------------------------------------------------------------------
def _reference_forward(model, x, embed):
    xf = model.fft(x, model.freq_nums)
    N, C, H, W = xf.shape
    p = model.patch_size
    Hp, Wp = H // p, W // p
    patches = xf.reshape(N, C, Hp, p, Wp, p).transpose(0, 2, 4, 1, 3, 5)
    patches = patches.reshape(N * Hp * Wp, C * p * p)
    hand = patches @ model.w_conv.astype(jnp.float32) + model.b_conv
    Nn, Hh, Ww, Ce = embed.shape
    emb = embed.reshape(Nn * Hh * Ww, Ce) @ model.w_eg.astype(jnp.float32) + model.b_eg
    z = hand + emb
    outs = []
    for d in range(model.depth):
        h = _gelu_tanh(z @ model.w_lw[d].astype(jnp.float32) + model.b_lw[d])
        outs.append(h @ model.w_shared.astype(jnp.float32) + model.b_shared)
    return jnp.stack(outs).reshape(model.depth, N, Hp * Wp, model.embed_dim)


# -----------------------------------------------------------------------------
if __name__ == "__main__":
    # Small, module-consistent shapes:
    #   image x:      (2, 3, 16, 16)  NCHW
    #   embeddings:   (2, 4, 4, 32)   = (N, H/p, W/p, embed_dim)
    #   embed_dim=32, scale_factor=4 (hid=8), depth=2, patch=4, freq_nums=0.25
    key = jax.random.PRNGKey(0)
    k_param, k_x, k_e = jax.random.split(key, 3)

    model = PromptGeneratorPallas(
        k_param, scale_factor=4, embed_dim=32, depth=2,
        freq_nums=0.25, img_size=16, patch_size=4)

    x = jax.random.normal(k_x, (2, 3, 16, 16), jnp.float32)
    embed = jax.random.normal(k_e, (2, 4, 4, 32), jnp.float32)

    prompts = model(x, embed)                       # (depth, N, S, embed_dim) bf16
    prompts = jax.block_until_ready(prompts)

    assert prompts.shape == (2, 2, 16, 32)
    prompts_f32 = prompts.astype(jnp.float32)
    assert bool(jnp.all(jnp.isfinite(prompts_f32)))

    # Tolerance-asserted pure-JAX reference (bf16 activations / bf16 output vs
    # f32 math with identical weights): expected max abs error ~1e-4 at these
    # init scales.
    ref = _reference_forward(model, x, embed)
    max_err = float(jnp.max(jnp.abs(prompts_f32 - ref)))
    assert max_err < 5e-3, f"max abs error vs f32 reference: {max_err}"

    print("KERNEL_OK")
</pallas_src>

<mosaic_0001>
module attributes {stable_mosaic.version = 11 : i64} {
  func.func @_linear_kernel(%arg0: i32, %arg1: memref<16x48xbf16, #tpu.memory_space<vmem>>, %arg2: memref<48x128xbf16, #tpu.memory_space<vmem>>, %arg3: memref<1x128xf32, #tpu.memory_space<vmem>>, %arg4: memref<16x128xbf16, #tpu.memory_space<vmem>>) attributes {dimension_semantics = [#tpu.dimension_semantics<parallel>], iteration_bounds = array<i64: 2>, scalar_prefetch = 0 : i64, scratch_operands = 0 : i64, tpu.core_type = #tpu.core_type<tc>, window_params = [{transform_indices = @transform_0, window_bounds = array<i64: 16, 48>}, {pipeline_mode = #tpu.pipeline_mode<synchronous>, transform_indices = @transform_1, window_bounds = array<i64: 48, 128>}, {pipeline_mode = #tpu.pipeline_mode<synchronous>, transform_indices = @transform_2, window_bounds = array<i64: 1, 128>}, {transform_indices = @transform_3, window_bounds = array<i64: 16, 128>}]} {
    %c0 = arith.constant 0 : index
    %c0_0 = arith.constant 0 : index
    %0 = vector.load %arg1[%c0, %c0_0] : memref<16x48xbf16, #tpu.memory_space<vmem>>, vector<16x48xbf16>
    %c0_1 = arith.constant 0 : index
    %c0_2 = arith.constant 0 : index
    %1 = vector.load %arg2[%c0_1, %c0_2] : memref<48x128xbf16, #tpu.memory_space<vmem>>, vector<48x128xbf16>
    %cst = arith.constant dense<0.000000e+00> : vector<16x128xf32>
    %2 = tpu.matmul %0, %1, %cst {dimension_numbers = #tpu.dot_dimension_numbers<[1], [0], [0], [1], [0, 0, 1, 1], [], []>} : vector<16x48xbf16>, vector<48x128xbf16>, vector<16x128xf32> -> vector<16x128xf32>
    %c0_3 = arith.constant 0 : index
    %c0_4 = arith.constant 0 : index
    %3 = vector.load %arg3[%c0_3, %c0_4] : memref<1x128xf32, #tpu.memory_space<vmem>>, vector<1x128xf32>
    %4 = vector.broadcast %3 : vector<1x128xf32> to vector<16x128xf32>
    %5 = arith.addf %2, %4 : vector<16x128xf32>
    %6 = arith.truncf %5 : vector<16x128xf32> to vector<16x128xbf16>
    %c0_5 = arith.constant 0 : index
    %c0_6 = arith.constant 0 : index
    %7 = vector.load %arg4[%c0_5, %c0_6] : memref<16x128xbf16, #tpu.memory_space<vmem>>, vector<16x128xbf16>
    tpu.vector_store %arg4[%c0_5, %c0_6], %6 {strides = array<i32>} : memref<16x128xbf16, #tpu.memory_space<vmem>>, vector<16x128xbf16>,
    return
  }
  func.func @transform_0(%arg0: i32) -> (i32, i32) {
    %c0_i32 = arith.constant 0 : i32
    %c0_i32_0 = arith.constant 0 : i32
    return %arg0, %c0_i32 : i32, i32
  }
  func.func @transform_1(%arg0: i32) -> (i32, i32) {
    %c0_i32 = arith.constant 0 : i32
    %c0_i32_0 = arith.constant 0 : i32
    %c0_i32_1 = arith.constant 0 : i32
    return %c0_i32, %c0_i32_0 : i32, i32
  }
  func.func @transform_2(%arg0: i32) -> (i32, i32) {
    %c0_i32 = arith.constant 0 : i32
    %c0_i32_0 = arith.constant 0 : i32
    %c0_i32_1 = arith.constant 0 : i32
    return %c0_i32, %c0_i32_0 : i32, i32
  }
  func.func @transform_3(%arg0: i32) -> (i32, i32) {
    %c0_i32 = arith.constant 0 : i32
    %c0_i32_0 = arith.constant 0 : i32
    return %arg0, %c0_i32 : i32, i32
  }
}

</mosaic_0001>

<llo_original>
// kernel: tpu_custom_call.1
$region0: #{tpu_custom_call.1}
  #allocation0 [shape = 'u32[]', space=smem, size = 0x4, offset = 0x4, fixed_abs, tag = 'smem constant byte address 0x4 - core index']
  #allocation1 [shape = 'u32[72,128]{1,0:T(1,128)}', space=vmem, size = 0x9000, scoped, tag = 'internal scratch']
  %s0 = inlined_call_operand.hbm [shape: bf16[32,48], index: 0, kind: input, shape index: {}]
  %s1 = inlined_call_operand.hbm [shape: bf16[48,128], index: 1, kind: input, shape index: {}]
  %s2 = inlined_call_operand.vmem [shape: f32[1,128], index: 2, kind: input, shape index: {}]
  %s3 = inlined_call_operand.hbm [shape: bf16[32,128], index: 3, kind: output, shape index: {}]
  %s4 = sld [smem:[#allocation0]]
  $region53: #{tpu_custom_call.1} parent=0
    _
  %s6 = ssub.s32 1, %s4
  %s7 = scalar_select 0, %s6, %s4
  $region1: #{tpu_custom_call.1} parent=0
    #allocation2 [shape = 'u8[8192]{0}', space=vmem, size = 0x2000, scoped, tag = 'input window, operand 0']
    #allocation3 [shape = 's32[2]{0}', space=sflag, size = 0x8, scoped, tag = 'scoped memory for tpu_custom_call.1']
    #allocation4 [shape = 's32[2]{0}', space=sflag, size = 0x8, scoped, tag = 'scoped memory for tpu_custom_call.1']
    #allocation5 [shape = 'u8[12288]{0}', space=vmem, size = 0x3000, scoped, tag = 'input window, operand 1, single buffered']
    #allocation6 [shape = 's32[1]{0}', space=sflag, size = 0x4, scoped, tag = 'scoped memory for tpu_custom_call.1']
    #allocation7 [shape = 'u8[8192]{0}', space=vmem, size = 0x2000, scoped, tag = 'output window, operand 0']
    %8 = vsyncpa [#allocation3], 0
    %s9 = scalar_lea.sflag [#allocation3], 1
    %10 = vsyncpa %s9, 0
    %11 = vsyncpa [#allocation6], 0
    %12 = vsyncpa [#allocation4], 0
    %s13 = scalar_lea.sflag [#allocation4], 1
    %14 = vsyncpa %s13, 0
    loop: start=0, step=1, limit=4
    $region2: #{tpu_custom_call.1} parent=1 // loop_pre_header
      _
    $region3: #{tpu_custom_call.1} parent=1 // loop_header
      %s16 = sphi 0, %s20
      %p17 = scmp.ge.s32.totalorder %s16, 4
      %s26 = sphi 0, %s28
      %s29 = sphi 0, %s26
      %s30 = sphi 0, %s29
      %s46 = sphi 0, %s30
      %s50 = sphi 0, %s50
      %s52 = sphi 0, %s50
      %s53 = sphi 0, %s52
      %s67 = sphi 0, %s53
      %s71 = sphi 0, %s71
      %s73 = sphi 0, %s71
      %s74 = sphi 0, %s73
      %s88 = sphi 0, %s74
      %s94 = sphi 0, %s96
      %s97 = sphi 0, %s94
      %s98 = sphi 0, %s97
      %s114 = sphi 0, %s98
    $region4: #{tpu_custom_call.1} parent=1 // loop_header_branch
      %19 = sbr.rel (%p17) target = $region8
    $region5: #{tpu_custom_call.1} parent=1 // loop_body
      %s21 = ssub.s32 %s16, 1
      %s22 = ssub.s32 %s16, 2
      %s23 = sadd.s32 %s16, 1
      %s24 = ssub.s32 %s16, %s23
      %p25 = scmp.eq.s32.totalorder %s24, 0
      %s27 = sadd.s32 %s26, 1
      %s28 = scalar_select %p25, %s26, %s27
      %p31 = pneg %p25
      %p32 = scmp.eq.s32.totalorder %s16, 1
      %p33 = por %p31, %p32
      %p34 = scmp.ne.s32.totalorder %s26, %s29
      %p35 = scmp.eq.s32.totalorder %s16, 0
      %p36 = por %p34, %p35
      %p37 = scmp.ne.s32.totalorder %s26, %s29
      %p38 = scmp.eq.s32.totalorder %s21, 1
      %p39 = por %p37, %p38
      %p40 = scmp.ne.s32.totalorder %s29, %s30
      %p41 = scmp.eq.s32.totalorder %s21, 0
      %p42 = por %p40, %p41
      %p43 = scmp.ne.s32.totalorder %s29, %s30
      %p44 = scmp.eq.s32.totalorder %s22, 1
      %p45 = por %p43, %p44
      %p47 = scmp.ne.s32.totalorder %s30, %s46
      %p48 = scmp.eq.s32.totalorder %s22, 0
      %p49 = por %p47, %p48
      %s51 = sadd.s32 %s50, 1
      %p54 = scmp.eq.s32.totalorder %s16, 1
      %p55 = scmp.ne.s32.totalorder %s50, %s52
      %p56 = scmp.eq.s32.totalorder %s16, 0
      %p57 = por %p55, %p56
      %p58 = scmp.ne.s32.totalorder %s50, %s52
      %p59 = scmp.eq.s32.totalorder %s21, 1
      %p60 = por %p58, %p59
      %p61 = scmp.ne.s32.totalorder %s52, %s53
      %p62 = scmp.eq.s32.totalorder %s21, 0
      %p63 = por %p61, %p62
      %p64 = scmp.ne.s32.totalorder %s52, %s53
      %p65 = scmp.eq.s32.totalorder %s22, 1
      %p66 = por %p64, %p65
      %p68 = scmp.ne.s32.totalorder %s53, %s67
      %p69 = scmp.eq.s32.totalorder %s22, 0
      %p70 = por %p68, %p69
      %s72 = sadd.s32 %s71, 1
      %p75 = scmp.eq.s32.totalorder %s16, 1
      %p76 = scmp.ne.s32.totalorder %s71, %s73
      %p77 = scmp.eq.s32.totalorder %s16, 0
      %p78 = por %p76, %p77
      %p79 = scmp.ne.s32.totalorder %s71, %s73
      %p80 = scmp.eq.s32.totalorder %s21, 1
      %p81 = por %p79, %p80
      %p82 = scmp.ne.s32.totalorder %s73, %s74
      %p83 = scmp.eq.s32.totalorder %s21, 0
      %p84 = por %p82, %p83
      %p85 = scmp.ne.s32.totalorder %s73, %s74
      %p86 = scmp.eq.s32.totalorder %s22, 1
      %p87 = por %p85, %p86
      %p89 = scmp.ne.s32.totalorder %s74, %s88
      %p90 = scmp.eq.s32.totalorder %s22, 0
      %p91 = por %p89, %p90
      %s92 = ssub.s32 %s16, %s23
      %p93 = scmp.eq.s32.totalorder %s92, 0
      %s95 = sadd.s32 %s94, 1
      %s96 = scalar_select %p93, %s94, %s95
      %p99 = pneg %p93
      %p100 = scmp.eq.s32.totalorder %s16, 1
      %p101 = por %p99, %p100
      %p102 = scmp.ne.s32.totalorder %s94, %s97
      %p103 = scmp.eq.s32.totalorder %s16, 0
      %p104 = por %p102, %p103
      %p105 = scmp.ne.s32.totalorder %s94, %s97
      %p106 = scmp.eq.s32.totalorder %s21, 1
      %p107 = por %p105, %p106
      %p108 = scmp.ne.s32.totalorder %s97, %s98
      %p109 = scmp.eq.s32.totalorder %s21, 0
      %p110 = por %p108, %p109
      %p111 = scmp.ne.s32.totalorder %s97, %s98
      %p112 = scmp.eq.s32.totalorder %s22, 1
      %p113 = por %p111, %p112
      %p115 = scmp.ne.s32.totalorder %s98, %s114
      %p116 = scmp.eq.s32.totalorder %s22, 0
      %p117 = por %p115, %p116
      %p118 = scmp.le.s32.totalorder 1, %s16
      %p119 = scmp.lt.s32.totalorder %s16, 3
      %p120 = pnand %p118, %p119
      %p121 = pneg %p120
      // Predicated region
      $region9: #{tpu_custom_call.1} parent=5 // pred_check
        _
      $region10: #{tpu_custom_call.1} parent=5 // pred_check_branch
        %123 = sbr.rel (%p120) target = $region12
      $region11: #{tpu_custom_call.1} parent=5 // pred_region
        %s124 = ssub.s32 %s16, 1
        // Predicated region
        $region13: #{tpu_custom_call.1} parent=11 // pred_check
          %p125 = pneg %p63
        $region14: #{tpu_custom_call.1} parent=11 // pred_check_branch
          %127 = sbr.rel (%p125) target = $region16
        $region15: #{tpu_custom_call.1} parent=11 // pred_region
          %129 = vsyncadd [#allocation6], 0
          %s130 = sshll.u32 %s1, 4
          %s131 = int_to_ptr.hbm [resolvable:$true] %s130
          %s132 = sshll.u32 [#allocation5], 4
          %s133 = int_to_ptr.vmem [resolvable:$true] %s132
          %138 = dma.hbm_to_vmem [thread:$0]  %s131, 384, %s133, [#allocation6], 64, 64, 4
        $region16: #{tpu_custom_call.1} parent=11 // pred_fallthru
          _
        // Predicated region
        $region17: #{tpu_custom_call.1} parent=11 // pred_check
          %p139 = pneg %p84
        $region18: #{tpu_custom_call.1} parent=11 // pred_check_branch
          %141 = sbr.rel (%p139) target = $region20
        $region19: #{tpu_custom_call.1} parent=11 // pred_region
          _
        $region20: #{tpu_custom_call.1} parent=11 // pred_fallthru
          _
      $region12: #{tpu_custom_call.1} parent=5 // pred_fallthru
        _
      %p142 = scmp.lt.s32.totalorder %s16, 2
      // Predicated region
      $region21: #{tpu_custom_call.1} parent=5 // pred_check
        %p143 = pneg %p142
      $region22: #{tpu_custom_call.1} parent=5 // pred_check_branch
        %145 = sbr.rel (%p143) target = $region24
      $region23: #{tpu_custom_call.1} parent=5 // pred_region
        // Predicated region
        $region25: #{tpu_custom_call.1} parent=23 // pred_check
          %p146 = pneg %p36
        $region26: #{tpu_custom_call.1} parent=23 // pred_check_branch
          %148 = sbr.rel (%p146) target = $region28
        $region27: #{tpu_custom_call.1} parent=23 // pred_region
          %s149 = sand.u32 %s26, 1
          %s150 = scalar_lea.sflag [#allocation3], %s149
          %s151 = sand.u32 %s26, 1
          %s152 = smul.addr %s151, 8
          %s153 = scalar_lea.vmem [#allocation2], %s152
          %s154 = smul.u32 2, %s16
          %156 = vsyncadd %s150, 0
          %s157 = smul.addr %s154, 4
          %s158 = scalar_lea.hbm %s0, %s157
          %s159 = sshll.u32 %s158, 4
          %s160 = int_to_ptr.hbm [resolvable:$true] %s159
          %s161 = sshll.u32 %s153, 4
          %s162 = int_to_ptr.vmem [resolvable:$true] %s161
          %167 = dma.hbm_to_vmem [thread:$0]  %s160, 128, %s162, %s150, 64, 64, 4
        $region28: #{tpu_custom_call.1} parent=23 // pred_fallthru
          _
      $region24: #{tpu_custom_call.1} parent=5 // pred_fallthru
        _
      %p168 = scmp.le.s32.totalorder 1, %s16
      %p169 = scmp.lt.s32.totalorder %s16, 3
      %p170 = pnand %p168, %p169
      %p171 = pneg %p170
      // Predicated region
      $region29: #{tpu_custom_call.1} parent=5 // pred_check
        _
      $region30: #{tpu_custom_call.1} parent=5 // pred_check_branch
        %173 = sbr.rel (%p170) target = $region32
      $region31: #{tpu_custom_call.1} parent=5 // pred_region
        %s174 = ssub.s32 %s16, 1
        %s175 = sand.u32 %s29, 1
        %s176 = scalar_lea.sflag [#allocation3], %s175
        %s177 = sand.u32 %s29, 1
        %s178 = smul.addr %s177, 8
        %s179 = scalar_lea.vmem [#allocation2], %s178
        // Predicated region
        $region33: #{tpu_custom_call.1} parent=31 // pred_check
          %p180 = pneg %p42
        $region34: #{tpu_custom_call.1} parent=31 // pred_check_branch
          %182 = sbr.rel (%p180) target = $region36
        $region35: #{tpu_custom_call.1} parent=31 // pred_region
          %184 = dma.done %s176, 128
        $region36: #{tpu_custom_call.1} parent=31 // pred_fallthru
          _
        // Predicated region
        $region37: #{tpu_custom_call.1} parent=31 // pred_check
          %p185 = pneg %p63
        $region38: #{tpu_custom_call.1} parent=31 // pred_check_branch
          %187 = sbr.rel (%p185) target = $region40
        $region39: #{tpu_custom_call.1} parent=31 // pred_region
          %189 = dma.done [#allocation6], 384
        $region40: #{tpu_custom_call.1} parent=31 // pred_fallthru
          _
        %s190 = sand.u32 %s29, 1
        %s191 = scalar_lea.sflag [#allocation3], %s190
        %s192 = sand.u32 %s29, 1
        %s193 = smul.addr %s192, 8
        %s194 = scalar_lea.vmem [#allocation2], %s193
        %p195 = pneg %p42
        %p196 = pneg %p39
        %p197 = pneg %p63
        %p198 = pneg %p60
        %p199 = pneg %p84
        %p200 = pneg %p81
        %p201 = pneg %p110
        %p202 = pneg %p107
        %s203 = sand.u32 %s97, 1
        %s204 = scalar_lea.sflag [#allocation4], %s203
        %s205 = sand.u32 %s97, 1
        %s206 = smul.addr %s205, 8
        %s207 = scalar_lea.vmem [#allocation7], %s206
        %s208 = smul.u32 2, %s21
        %s209 = smul.u32 2, %s21
        %v211 = vld [vmem:[%s179] sm:$0xf]
        %v212 = vld [vmem:[%s179 + $0x4] sm:$0xf]
        %v213 = vld [vmem:[#allocation5] sm:$0xf]
        %v214 = vld [vmem:[#allocation5 + $0x4] sm:$0xf]
        %v215 = vld [vmem:[#allocation5 + $0x8] sm:$0xf]
        %v216 = vld [vmem:[#allocation5 + $0xc] sm:$0xf]
        %v217 = vld [vmem:[#allocation5 + $0x10] sm:$0xf]
        %v218 = vld [vmem:[#allocation5 + $0x14] sm:$0xf]
        %v219 = vld [vmem:[%s2] sm:$0x1]
        %v221 = vperm.slane %v219, 0
        %v225 = vunpack.c.l.b16 %v211
        %v226 = vunpack.c.l.b16 %v212
        %v227 = vpack.c.b16 %v226, %v225
        %v234 = vunpack.c.l.b16 %v213
        %v235 = vunpack.c.l.b16 %v214
        %v236 = vunpack.c.l.b16 %v215
        %v237 = vunpack.c.l.b16 %v216
        %v238 = vunpack.c.l.b16 %v217
        %v239 = vunpack.c.l.b16 %v218
        %v240 = vpack.c.b16 %v235, %v234
        %v241 = vpack.c.b16 %v237, %v236
        %v242 = vpack.c.b16 %v239, %v238
        %vm246 = vcmask 392192
        %v248 = vsel %vm246, %v227, 0
        %250 = vmatpush.bf16.msra.mxu0 0
        %251 = vmatpush.bf16.msra.mxu0 0
        %252 = vmatpush.bf16.msra.mxu0 0
        %253 = vmatpush.bf16.msra.mxu0 0
        %254 = vmatpush.bf16.msra.mxu0 0
        %255 = vmatpush.bf16.msra.mxu0 %v242
        %256 = vmatpush.bf16.msra.mxu0 %v241
        %257 = vmatpush.bf16.msra.mxu0 %v240
        %258 = vmatmul.bf16.gmra.mxu0 %v248
        %v259 = vpop.f32.mrf.mxu0
        %v260 = vadd.f32 %v221, %v259
        %v261 = vpop.f32.mrf.mxu0
        %v262 = vadd.f32 %v221, %v261
        %263 = vdwg.mxu0
        %v264 = vpack.c.bf16 %v260, %v260
        %v265 = vpack.c.bf16 %v262, %v262
        %266 = vst [vmem:[%s207] sm:$0xf] %v264
        %267 = vst [vmem:[%s207 + $0x4] sm:$0xf] %v265
        %s268 = sand.u32 %s97, 1
        %s269 = scalar_lea.sflag [#allocation4], %s268
        %s270 = sand.u32 %s97, 1
        %s271 = smul.addr %s270, 8
        %s272 = scalar_lea.vmem [#allocation7], %s271
        // Predicated region
        $region41: #{tpu_custom_call.1} parent=31 // pred_check
          %p273 = pneg %p107
        $region42: #{tpu_custom_call.1} parent=31 // pred_check_branch
          %275 = sbr.rel (%p273) target = $region44
        $region43: #{tpu_custom_call.1} parent=31 // pred_region
          %s276 = smul.u32 2, %s21
          %278 = vsyncadd %s269, 0
          %s279 = smul.addr %s276, 4
          %s280 = scalar_lea.hbm %s3, %s279
          %s281 = sshll.u32 %s272, 4
          %s282 = int_to_ptr.vmem [resolvable:$true] %s281
          %s283 = sshll.u32 %s280, 4
          %s284 = int_to_ptr.hbm [resolvable:$true] %s283
          %289 = dma.vmem_to_hbm [thread:$0]  %s282, 128, %s284, %s269, 64, 64, 4
        $region44: #{tpu_custom_call.1} parent=31 // pred_fallthru
          _
      $region32: #{tpu_custom_call.1} parent=5 // pred_fallthru
        _
      %p290 = scmp.le.s32.totalorder 2, %s16
      // Predicated region
      $region45: #{tpu_custom_call.1} parent=5 // pred_check
        %p291 = pneg %p290
      $region46: #{tpu_custom_call.1} parent=5 // pred_check_branch
        %293 = sbr.rel (%p291) target = $region48
      $region47: #{tpu_custom_call.1} parent=5 // pred_region
        %s294 = ssub.s32 %s16, 2
        // Predicated region
        $region49: #{tpu_custom_call.1} parent=47 // pred_check
          %p295 = pneg %p113
        $region50: #{tpu_custom_call.1} parent=47 // pred_check_branch
          %297 = sbr.rel (%p295) target = $region52
        $region51: #{tpu_custom_call.1} parent=47 // pred_region
          %s298 = sand.u32 %s98, 1
          %s299 = scalar_lea.sflag [#allocation4], %s298
          %s300 = sand.u32 %s98, 1
          %s301 = smul.addr %s300, 8
          %s302 = scalar_lea.vmem [#allocation7], %s301
          %304 = dma.done %s299, 128
        $region52: #{tpu_custom_call.1} parent=47 // pred_fallthru
          _
      $region48: #{tpu_custom_call.1} parent=5 // pred_fallthru
        _
    $region6: #{tpu_custom_call.1} parent=1 // loop_footer
      %s20 = sadd.s32 1, %s16
    $region7: #{tpu_custom_call.1} parent=1 // loop_footer_branch
      %15 = sbr.rel target = $region3
    $region8: #{tpu_custom_call.1} parent=1 // loop_exit
      _
    %305 = vsyncpa [#allocation3], 1
    %s306 = scalar_lea.sflag [#allocation3], 1
    %307 = vsyncpa %s306, 1
    %308 = vsyncpa [#allocation6], 1
    %309 = vsyncpa [#allocation4], 1
    %s310 = scalar_lea.sflag [#allocation4], 1
    %311 = vsyncpa %s310, 1

</llo_original>
